<compile_context>
chip_gen: v7x
topology: tpu7x:2x2x1
jax: 0.10.0
libtpu: 0.0.40
codegen_flags: <defaults>
</compile_context>

<pallas_src>
import functools

import jax
import jax.numpy as jnp
from jax import lax
from jax.experimental import pallas as pl
from jax.experimental.pallas import tpu as pltpu


def _self_attention_kernel(h_ref, w1_ref, b1_ref, w2_ref, b2_ref, m_ref, a_ref,
                           *, seq_len):
    # h_ref:  (Bt, Lp, H)   streaming input block (Bt batch elements per step)
    # w1_ref: (H, Attn)     W1 pre-transposed (resident)   b1_ref: (1, Attn)
    # w2_ref: (Attn, NH)    W2 pre-transposed (resident)   b2_ref: (1, NH)
    # m_ref:  (Bt, NH, H)
    # a_ref:  (Bt, NH, Lp)  lane-dense over the sequence axis
    bt, lp, hdim = h_ref.shape
    nh = a_ref.shape[1]

    h = h_ref[...]                                   # native dtype (bf16 stays bf16)
    # Lp % 8 == 0 (wrapper pads), so this reshape is a pure sublane relabel.
    hf = h.reshape(bt * lp, hdim)

    # x = tanh(hidden @ W1^T + b1) -- weights pre-transposed once at init.
    x = jnp.tanh(
        jnp.dot(hf, w1_ref[...], preferred_element_type=jnp.float32) + b1_ref[...]
    )                                                # (Bt*Lp, Attn) f32

    # scores = x @ W2^T + b2
    s = (
        jnp.dot(x.astype(h.dtype), w2_ref[...], preferred_element_type=jnp.float32)
        + b2_ref[...]
    )                                                # (Bt*Lp, NH) f32

    # Relayout to (Bt, NH, Lp): sequence on the lane axis.  Tiny XLU transpose
    # (co-issues with MXU work); makes the softmax reduction and the A store
    # lane-dense and lets the M matmul contract L without a trans_a path.
    s = jnp.swapaxes(s.reshape(bt, lp, nh), 1, 2)    # (Bt, NH, Lp) f32

    if lp != seq_len:                                # mask padded sequence slots
        lane = lax.broadcasted_iota(jnp.int32, s.shape, 2)
        s = jnp.where(lane < seq_len, s, -jnp.inf)

    # Numerically-stable softmax over the sequence axis (PyTorch dim=1).
    s = s - jnp.max(s, axis=-1, keepdims=True)
    e = jnp.exp(s)
    denom = jnp.sum(e, axis=-1, keepdims=True)
    p = e * pl.reciprocal(denom, approx=True)        # EUP slot, ~free

    # M[b] = A[b] @ hidden[b]: contract L directly, batched over Bt.
    m = lax.dot_general(
        p.astype(h.dtype), h,
        dimension_numbers=(((2,), (1,)), ((0,), (0,))),
        preferred_element_type=jnp.float32,
    )                                                # (Bt, NH, H) f32

    m_ref[...] = m.astype(m_ref.dtype)
    a_ref[...] = p.astype(a_ref.dtype)               # lane-dense (Bt, NH, Lp)


def _vmem_capacity_bytes():
    try:
        return int(pltpu.get_tpu_info().vmem_capacity_bytes)
    except Exception:
        return 64 * 1024 * 1024      # conservative: v7x per-TC physical VMEM


def _block_footprint_bytes(bt, lp, hdim, attn, nh, act_isz, w_isz, hidden_bufs=2):
    hidden_blk = hidden_bufs * bt * lp * hdim * act_isz          # streaming input
    out_blks = 2 * bt * nh * hdim * act_isz + 2 * bt * nh * lp * act_isz
    weights = (hdim * attn + attn + attn * nh + nh) * w_isz      # single-buffered
    interm = 2 * bt * lp * (attn + 2 * nh) * 4                   # f32 x/s/p (+slack)
    return hidden_blk + out_blks + weights + interm


def _pick_batch_tile(batch, lp, hdim, attn, nh, act_isz, w_isz, vmem_budget,
                     target_rows=1024):
    """Largest divisor bt of batch whose block fits VMEM and keeps bt*lp rows
    <= target_rows, preferring >=2 grid steps (megacore sharding on v7x)."""
    divisors = [d for d in range(1, batch + 1) if batch % d == 0]
    feasible = [
        d for d in divisors
        if d * lp <= max(target_rows, lp)
        and _block_footprint_bytes(d, lp, hdim, attn, nh, act_isz, w_isz)
        <= vmem_budget
    ]
    if not feasible:
        # TODO(synk): structural Attn/H tiling fallback when even bt=1 overflows.
        feasible = [1]
    multi = [d for d in feasible if batch // d >= 2]
    return max(multi) if multi else max(feasible)


def prepare_weights(w1, b1, w2, b2):
    """One-time (init) weight prep: transpose once, NOT per forward call."""
    return (
        jnp.transpose(w1),               # (H, Attn)
        b1.reshape(1, -1),               # (1, Attn)
        jnp.transpose(w2),               # (Attn, NH)
        b2.reshape(1, -1),               # (1, NH)
    )


@jax.jit
def self_attention(hidden, w1_t, b1_2d, w2_t, b2_2d):
    """hidden: (B, L, H); weights from prepare_weights(). Returns (M, A)."""
    B, L, H = hidden.shape
    A_sz = w1_t.shape[1]
    NH = w2_t.shape[1]

    # Pad L to a sublane multiple so the in-kernel row-flatten is free.
    Lp = ((L + 7) // 8) * 8
    hidden_p = hidden if Lp == L else jnp.pad(hidden, ((0, 0), (0, Lp - L), (0, 0)))

    act_isz = hidden.dtype.itemsize
    w_isz = w1_t.dtype.itemsize

    vmem_cap = _vmem_capacity_bytes()
    vmem_limit = int(0.8 * vmem_cap)               # ~80% of physical per-TC VMEM
    bt = _pick_batch_tile(B, Lp, H, A_sz, NH, act_isz, w_isz,
                          vmem_budget=int(0.6 * vmem_cap))
    grid = (B // bt,)

    grid_spec = pltpu.PrefetchScalarGridSpec(
        num_scalar_prefetch=0,
        grid=grid,
        in_specs=[
            # Streaming input (default double-buffering).
            # TODO(synk): sweep pipeline_mode=pl.Buffered(3) here after profiling.
            pl.BlockSpec((bt, Lp, H), lambda b: (b, 0, 0)),
            # Resident operands: constant index_map -> single buffer saves VMEM.
            pl.BlockSpec((H, A_sz), lambda b: (0, 0), pipeline_mode=pl.Buffered(1)),
            pl.BlockSpec((1, A_sz), lambda b: (0, 0), pipeline_mode=pl.Buffered(1)),
            pl.BlockSpec((A_sz, NH), lambda b: (0, 0), pipeline_mode=pl.Buffered(1)),
            pl.BlockSpec((1, NH), lambda b: (0, 0), pipeline_mode=pl.Buffered(1)),
        ],
        out_specs=[
            pl.BlockSpec((bt, NH, H), lambda b: (b, 0, 0)),    # M
            pl.BlockSpec((bt, NH, Lp), lambda b: (b, 0, 0)),   # A (lane-dense over L)
        ],
    )

    flops = 2 * B * L * H * A_sz + 2 * B * L * A_sz * NH + 2 * B * NH * L * H
    transcendentals = B * L * (A_sz + NH) + B * NH
    bytes_accessed = (
        B * Lp * H * act_isz
        + (H * A_sz + A_sz + A_sz * NH + NH) * w_isz
        + (B * NH * H + B * NH * Lp) * act_isz
    )

    M, A_full = pl.pallas_call(
        functools.partial(_self_attention_kernel, seq_len=L),
        out_shape=(
            jax.ShapeDtypeStruct((B, NH, H), hidden.dtype),
            jax.ShapeDtypeStruct((B, NH, Lp), hidden.dtype),
        ),
        grid_spec=grid_spec,
        compiler_params=pltpu.CompilerParams(
            dimension_semantics=("parallel",),
            vmem_limit_bytes=vmem_limit,
        ),
        cost_estimate=pl.CostEstimate(
            flops=int(flops),
            transcendentals=int(transcendentals),
            bytes_accessed=int(bytes_accessed),
        ),
    )(hidden_p, w1_t, b1_2d, w2_t, b2_2d)

    A = A_full if Lp == L else A_full[:, :, :L]
    return M, A


def self_attention_ref(hidden, w1, b1, w2, b2):
    """Pure-JAX reference mirroring the PyTorch forward."""
    x = jnp.tanh(jnp.einsum("blh,ah->bla", hidden, w1) + b1)
    s = jnp.einsum("bla,na->bln", x, w2) + b2
    p = jax.nn.softmax(s, axis=1)            # softmax over sequence dim
    A = jnp.swapaxes(p, 1, 2)                # (B, NH, L)
    M = A @ hidden                           # (B, NH, H)
    return M, A


if __name__ == "__main__":
    batch, seq_len, hidden_size = 2, 8, 32
    attention_size, n_heads = 16, 4

    key = jax.random.PRNGKey(0)
    k_h, k_w1, k_b1, k_w2, k_b2 = jax.random.split(key, 5)

    hidden = jax.random.normal(k_h, (batch, seq_len, hidden_size), dtype=jnp.float32)
    w1 = jax.random.normal(k_w1, (attention_size, hidden_size), dtype=jnp.float32) * 0.1
    b1 = jax.random.normal(k_b1, (attention_size,), dtype=jnp.float32) * 0.1
    w2 = jax.random.normal(k_w2, (n_heads, attention_size), dtype=jnp.float32) * 0.1
    b2 = jax.random.normal(k_b2, (n_heads,), dtype=jnp.float32) * 0.1

    # One-time weight prep (init-time), not part of the per-call forward.
    w1_t, b1_2d, w2_t, b2_2d = prepare_weights(w1, b1, w2, b2)
    jax.block_until_ready((w1_t, b1_2d, w2_t, b2_2d))

    M, A = self_attention(hidden, w1_t, b1_2d, w2_t, b2_2d)
    jax.block_until_ready((M, A))

    M_ref, A_ref = self_attention_ref(hidden, w1, b1, w2, b2)
    assert M.shape == (batch, n_heads, hidden_size)
    assert A.shape == (batch, n_heads, seq_len)
    # Tolerance accounts for the approximate (EUP) reciprocal in the softmax.
    assert jnp.allclose(M, M_ref, atol=2e-3, rtol=2e-3)
    assert jnp.allclose(A, A_ref, atol=2e-3, rtol=2e-3)

    print("KERNEL_OK")
</pallas_src>

<mosaic_0001>
module attributes {stable_mosaic.version = 11 : i64} {
  func.func @_self_attention_kernel(%arg0: i32, %arg1: memref<1x8x32xf32, #tpu.memory_space<vmem>>, %arg2: memref<32x16xf32, #tpu.memory_space<vmem>>, %arg3: memref<1x16xf32, #tpu.memory_space<vmem>>, %arg4: memref<16x4xf32, #tpu.memory_space<vmem>>, %arg5: memref<1x4xf32, #tpu.memory_space<vmem>>, %arg6: memref<1x4x32xf32, #tpu.memory_space<vmem>>, %arg7: memref<1x4x8xf32, #tpu.memory_space<vmem>>) attributes {dimension_semantics = [#tpu.dimension_semantics<parallel>], iteration_bounds = array<i64: 2>, scalar_prefetch = 0 : i64, scratch_operands = 0 : i64, tpu.core_type = #tpu.core_type<tc>, window_params = [{transform_indices = @transform_0, window_bounds = array<i64: 1, 8, 32>}, {pipeline_mode = #tpu.pipeline_mode<synchronous>, transform_indices = @transform_1, window_bounds = array<i64: 32, 16>}, {pipeline_mode = #tpu.pipeline_mode<synchronous>, transform_indices = @transform_2, window_bounds = array<i64: 1, 16>}, {pipeline_mode = #tpu.pipeline_mode<synchronous>, transform_indices = @transform_3, window_bounds = array<i64: 16, 4>}, {pipeline_mode = #tpu.pipeline_mode<synchronous>, transform_indices = @transform_4, window_bounds = array<i64: 1, 4>}, {transform_indices = @transform_5, window_bounds = array<i64: 1, 4, 32>}, {transform_indices = @transform_6, window_bounds = array<i64: 1, 4, 8>}]} {
    %c0 = arith.constant 0 : index
    %c0_0 = arith.constant 0 : index
    %c0_1 = arith.constant 0 : index
    %0 = vector.load %arg1[%c0, %c0_0, %c0_1] : memref<1x8x32xf32, #tpu.memory_space<vmem>>, vector<1x8x32xf32>
    %1 = vector.shape_cast %0 : vector<1x8x32xf32> to vector<8x32xf32>
    %c0_2 = arith.constant 0 : index
    %c0_3 = arith.constant 0 : index
    %2 = vector.load %arg2[%c0_2, %c0_3] : memref<32x16xf32, #tpu.memory_space<vmem>>, vector<32x16xf32>
    %cst = arith.constant dense<0.000000e+00> : vector<8x16xf32>
    %3 = tpu.matmul %1, %2, %cst {dimension_numbers = #tpu.dot_dimension_numbers<[1], [0], [0], [1], [0, 0, 1, 1], [], []>} : vector<8x32xf32>, vector<32x16xf32>, vector<8x16xf32> -> vector<8x16xf32>
    %c0_4 = arith.constant 0 : index
    %c0_5 = arith.constant 0 : index
    %4 = vector.load %arg3[%c0_4, %c0_5] : memref<1x16xf32, #tpu.memory_space<vmem>>, vector<1x16xf32>
    %5 = vector.broadcast %4 : vector<1x16xf32> to vector<8x16xf32>
    %6 = arith.addf %3, %5 : vector<8x16xf32>
    %7 = math.tanh %6 : vector<8x16xf32>
    %c0_6 = arith.constant 0 : index
    %c0_7 = arith.constant 0 : index
    %8 = vector.load %arg4[%c0_6, %c0_7] : memref<16x4xf32, #tpu.memory_space<vmem>>, vector<16x4xf32>
    %cst_8 = arith.constant dense<0.000000e+00> : vector<8x4xf32>
    %9 = tpu.matmul %7, %8, %cst_8 {dimension_numbers = #tpu.dot_dimension_numbers<[1], [0], [0], [1], [0, 0, 1, 1], [], []>} : vector<8x16xf32>, vector<16x4xf32>, vector<8x4xf32> -> vector<8x4xf32>
    %c0_9 = arith.constant 0 : index
    %c0_10 = arith.constant 0 : index
    %10 = vector.load %arg5[%c0_9, %c0_10] : memref<1x4xf32, #tpu.memory_space<vmem>>, vector<1x4xf32>
    %11 = vector.broadcast %10 : vector<1x4xf32> to vector<8x4xf32>
    %12 = arith.addf %9, %11 : vector<8x4xf32>
    %13 = vector.shape_cast %12 : vector<8x4xf32> to vector<1x8x4xf32>
    %14 = tpu.transpose %13, [0, 2, 1] : vector<1x8x4xf32> -> vector<1x4x8xf32>
    %cst_11 = arith.constant dense<0xFF800000> : vector<1x4xf32>
    %15 = vector.multi_reduction <maximumf>, %14, %cst_11 [2] : vector<1x4x8xf32> to vector<1x4xf32>
    %16 = vector.shape_cast %15 : vector<1x4xf32> to vector<1x4x1xf32>
    %17 = vector.broadcast %16 : vector<1x4x1xf32> to vector<1x4x8xf32>
    %18 = arith.subf %14, %17 : vector<1x4x8xf32>
    %19 = math.exp %18 : vector<1x4x8xf32>
    %cst_12 = arith.constant dense<0.000000e+00> : vector<1x4xf32>
    %20 = vector.multi_reduction <add>, %19, %cst_12 [2] : vector<1x4x8xf32> to vector<1x4xf32>
    %21 = vector.shape_cast %20 : vector<1x4xf32> to vector<1x4x1xf32>
    %22 = tpu.reciprocal %21 {approx = true} : vector<1x4x1xf32> -> vector<1x4x1xf32>
    %23 = vector.broadcast %22 : vector<1x4x1xf32> to vector<1x4x8xf32>
    %24 = arith.mulf %19, %23 : vector<1x4x8xf32>
    %cst_13 = arith.constant dense<0.000000e+00> : vector<1x4x32xf32>
    %25 = tpu.matmul %24, %0, %cst_13 {dimension_numbers = #tpu.dot_dimension_numbers<[2], [1], [1], [2], [0, 0, 0, 1, 1, 2], [0], [0]>} : vector<1x4x8xf32>, vector<1x8x32xf32>, vector<1x4x32xf32> -> vector<1x4x32xf32>
    %c0_14 = arith.constant 0 : index
    %c0_15 = arith.constant 0 : index
    %c0_16 = arith.constant 0 : index
    %26 = vector.load %arg6[%c0_14, %c0_15, %c0_16] : memref<1x4x32xf32, #tpu.memory_space<vmem>>, vector<1x4x32xf32>
    tpu.vector_store %arg6[%c0_14, %c0_15, %c0_16], %25 {strides = array<i32>} : memref<1x4x32xf32, #tpu.memory_space<vmem>>, vector<1x4x32xf32>,
    %c0_17 = arith.constant 0 : index
    %c0_18 = arith.constant 0 : index
    %c0_19 = arith.constant 0 : index
    %27 = vector.load %arg7[%c0_17, %c0_18, %c0_19] : memref<1x4x8xf32, #tpu.memory_space<vmem>>, vector<1x4x8xf32>
    tpu.vector_store %arg7[%c0_17, %c0_18, %c0_19], %24 {strides = array<i32>} : memref<1x4x8xf32, #tpu.memory_space<vmem>>, vector<1x4x8xf32>,
    return
  }
  func.func @transform_0(%arg0: i32) -> (i32, i32, i32) {
    %c0_i32 = arith.constant 0 : i32
    %c0_i32_0 = arith.constant 0 : i32
    %c0_i32_1 = arith.constant 0 : i32
    return %arg0, %c0_i32, %c0_i32_0 : i32, i32, i32
  }
  func.func @transform_1(%arg0: i32) -> (i32, i32) {
    %c0_i32 = arith.constant 0 : i32
    %c0_i32_0 = arith.constant 0 : i32
    %c0_i32_1 = arith.constant 0 : i32
    return %c0_i32, %c0_i32_0 : i32, i32
  }
  func.func @transform_2(%arg0: i32) -> (i32, i32) {
    %c0_i32 = arith.constant 0 : i32
    %c0_i32_0 = arith.constant 0 : i32
    %c0_i32_1 = arith.constant 0 : i32
    return %c0_i32, %c0_i32_0 : i32, i32
  }
  func.func @transform_3(%arg0: i32) -> (i32, i32) {
    %c0_i32 = arith.constant 0 : i32
    %c0_i32_0 = arith.constant 0 : i32
    %c0_i32_1 = arith.constant 0 : i32
    return %c0_i32, %c0_i32_0 : i32, i32
  }
  func.func @transform_4(%arg0: i32) -> (i32, i32) {
    %c0_i32 = arith.constant 0 : i32
    %c0_i32_0 = arith.constant 0 : i32
    %c0_i32_1 = arith.constant 0 : i32
    return %c0_i32, %c0_i32_0 : i32, i32
  }
  func.func @transform_5(%arg0: i32) -> (i32, i32, i32) {
    %c0_i32 = arith.constant 0 : i32
    %c0_i32_0 = arith.constant 0 : i32
    %c0_i32_1 = arith.constant 0 : i32
    return %arg0, %c0_i32, %c0_i32_0 : i32, i32, i32
  }
  func.func @transform_6(%arg0: i32) -> (i32, i32, i32) {
    %c0_i32 = arith.constant 0 : i32
    %c0_i32_0 = arith.constant 0 : i32
    %c0_i32_1 = arith.constant 0 : i32
    return %arg0, %c0_i32, %c0_i32_0 : i32, i32, i32
  }
}

</mosaic_0001>

<llo_original>
// kernel: self_attention.1
$region0: #{self_attention.1}
  #allocation0 [shape = 'u32[]', space=smem, size = 0x4, offset = 0x4, fixed_abs, tag = 'smem constant byte address 0x4 - core index']
  #allocation1 [shape = 'u32[144,128]{1,0:T(1,128)}', space=vmem, size = 0x12000, scoped, tag = 'internal scratch']
  %s0 = inlined_call_operand.vmem [shape: f32[2,8,32], index: 0, kind: input, shape index: {}]
  %s1 = inlined_call_operand.vmem [shape: f32[32,16], index: 1, kind: input, shape index: {}]
  %s2 = inlined_call_operand.vmem [shape: f32[1,16], index: 2, kind: input, shape index: {}]
  %s3 = inlined_call_operand.vmem [shape: f32[16,4], index: 3, kind: input, shape index: {}]
  %s4 = inlined_call_operand.vmem [shape: f32[1,4], index: 4, kind: input, shape index: {}]
  %s5 = inlined_call_operand.hbm [shape: f32[2,4,32], index: 5, kind: output, shape index: {0}]
  %s6 = inlined_call_operand.hbm [shape: f32[2,4,8], index: 6, kind: output, shape index: {1}]
  %7 = xla_tuple %s5, %s6
  %s8 = sld [smem:[#allocation0]]
  $region61: #{self_attention.1} parent=0
    _
  %s10 = ssub.s32 1, %s8
  %s11 = scalar_select 0, %s10, %s8
  $region1: #{self_attention.1} parent=0
    #allocation2 [shape = 'u8[4096]{0}', space=vmem, size = 0x1000, scoped, tag = 'output window, operand 0']
    #allocation3 [shape = 's32[2]{0}', space=sflag, size = 0x8, scoped, tag = 'scoped memory for self_attention.1']
    #allocation4 [shape = 'u8[4096]{0}', space=vmem, size = 0x1000, scoped, tag = 'output window, operand 1']
    #allocation5 [shape = 's32[2]{0}', space=sflag, size = 0x8, scoped, tag = 'scoped memory for self_attention.1']
    %12 = vsyncpa [#allocation3], 0
    %s13 = scalar_lea.sflag [#allocation3], 1
    %14 = vsyncpa %s13, 0
    %15 = vsyncpa [#allocation5], 0
    %s16 = scalar_lea.sflag [#allocation5], 1
    %17 = vsyncpa %s16, 0
    loop: start=0, step=1, limit=4
    $region2: #{self_attention.1} parent=1 // loop_pre_header
      _
    $region3: #{self_attention.1} parent=1 // loop_header
      %s19 = sphi 0, %s23
      %p20 = scmp.ge.s32.totalorder %s19, 4
      %s29 = sphi 0, %s31
      %s32 = sphi 0, %s29
      %s33 = sphi 0, %s32
      %s49 = sphi 0, %s33
      %s53 = sphi 0, %s53
      %s55 = sphi 0, %s53
      %s56 = sphi 0, %s55
      %s70 = sphi 0, %s56
      %s74 = sphi 0, %s74
      %s76 = sphi 0, %s74
      %s77 = sphi 0, %s76
      %s91 = sphi 0, %s77
      %s95 = sphi 0, %s95
      %s97 = sphi 0, %s95
      %s98 = sphi 0, %s97
      %s112 = sphi 0, %s98
      %s116 = sphi 0, %s116
      %s118 = sphi 0, %s116
      %s119 = sphi 0, %s118
      %s133 = sphi 0, %s119
      %s139 = sphi 0, %s141
      %s142 = sphi 0, %s139
      %s143 = sphi 0, %s142
      %s159 = sphi 0, %s143
      %s165 = sphi 0, %s167
      %s168 = sphi 0, %s165
      %s169 = sphi 0, %s168
      %s185 = sphi 0, %s169
    $region4: #{self_attention.1} parent=1 // loop_header_branch
      %22 = sbr.rel (%p20) target = $region8
    $region5: #{self_attention.1} parent=1 // loop_body
      %s24 = ssub.s32 %s19, 1
      %s25 = ssub.s32 %s19, 2
      %s26 = sadd.s32 %s19, 1
      %s27 = ssub.s32 %s19, %s26
      %p28 = scmp.eq.s32.totalorder %s27, 0
      %s30 = sadd.s32 %s29, 1
      %s31 = scalar_select %p28, %s29, %s30
      %p34 = pneg %p28
      %p35 = scmp.eq.s32.totalorder %s19, 1
      %p36 = por %p34, %p35
      %p37 = scmp.ne.s32.totalorder %s29, %s32
      %p38 = scmp.eq.s32.totalorder %s19, 0
      %p39 = por %p37, %p38
      %p40 = scmp.ne.s32.totalorder %s29, %s32
      %p41 = scmp.eq.s32.totalorder %s24, 1
      %p42 = por %p40, %p41
      %p43 = scmp.ne.s32.totalorder %s32, %s33
      %p44 = scmp.eq.s32.totalorder %s24, 0
      %p45 = por %p43, %p44
      %p46 = scmp.ne.s32.totalorder %s32, %s33
      %p47 = scmp.eq.s32.totalorder %s25, 1
      %p48 = por %p46, %p47
      %p50 = scmp.ne.s32.totalorder %s33, %s49
      %p51 = scmp.eq.s32.totalorder %s25, 0
      %p52 = por %p50, %p51
      %s54 = sadd.s32 %s53, 1
      %p57 = scmp.eq.s32.totalorder %s19, 1
      %p58 = scmp.ne.s32.totalorder %s53, %s55
      %p59 = scmp.eq.s32.totalorder %s19, 0
      %p60 = por %p58, %p59
      %p61 = scmp.ne.s32.totalorder %s53, %s55
      %p62 = scmp.eq.s32.totalorder %s24, 1
      %p63 = por %p61, %p62
      %p64 = scmp.ne.s32.totalorder %s55, %s56
      %p65 = scmp.eq.s32.totalorder %s24, 0
      %p66 = por %p64, %p65
      %p67 = scmp.ne.s32.totalorder %s55, %s56
      %p68 = scmp.eq.s32.totalorder %s25, 1
      %p69 = por %p67, %p68
      %p71 = scmp.ne.s32.totalorder %s56, %s70
      %p72 = scmp.eq.s32.totalorder %s25, 0
      %p73 = por %p71, %p72
      %s75 = sadd.s32 %s74, 1
      %p78 = scmp.eq.s32.totalorder %s19, 1
      %p79 = scmp.ne.s32.totalorder %s74, %s76
      %p80 = scmp.eq.s32.totalorder %s19, 0
      %p81 = por %p79, %p80
      %p82 = scmp.ne.s32.totalorder %s74, %s76
      %p83 = scmp.eq.s32.totalorder %s24, 1
      %p84 = por %p82, %p83
      %p85 = scmp.ne.s32.totalorder %s76, %s77
      %p86 = scmp.eq.s32.totalorder %s24, 0
      %p87 = por %p85, %p86
      %p88 = scmp.ne.s32.totalorder %s76, %s77
      %p89 = scmp.eq.s32.totalorder %s25, 1
      %p90 = por %p88, %p89
      %p92 = scmp.ne.s32.totalorder %s77, %s91
      %p93 = scmp.eq.s32.totalorder %s25, 0
      %p94 = por %p92, %p93
      %s96 = sadd.s32 %s95, 1
      %p99 = scmp.eq.s32.totalorder %s19, 1
      %p100 = scmp.ne.s32.totalorder %s95, %s97
      %p101 = scmp.eq.s32.totalorder %s19, 0
      %p102 = por %p100, %p101
      %p103 = scmp.ne.s32.totalorder %s95, %s97
      %p104 = scmp.eq.s32.totalorder %s24, 1
      %p105 = por %p103, %p104
      %p106 = scmp.ne.s32.totalorder %s97, %s98
      %p107 = scmp.eq.s32.totalorder %s24, 0
      %p108 = por %p106, %p107
      %p109 = scmp.ne.s32.totalorder %s97, %s98
      %p110 = scmp.eq.s32.totalorder %s25, 1
      %p111 = por %p109, %p110
      %p113 = scmp.ne.s32.totalorder %s98, %s112
      %p114 = scmp.eq.s32.totalorder %s25, 0
      %p115 = por %p113, %p114
      %s117 = sadd.s32 %s116, 1
      %p120 = scmp.eq.s32.totalorder %s19, 1
      %p121 = scmp.ne.s32.totalorder %s116, %s118
      %p122 = scmp.eq.s32.totalorder %s19, 0
      %p123 = por %p121, %p122
      %p124 = scmp.ne.s32.totalorder %s116, %s118
      %p125 = scmp.eq.s32.totalorder %s24, 1
      %p126 = por %p124, %p125
      %p127 = scmp.ne.s32.totalorder %s118, %s119
      %p128 = scmp.eq.s32.totalorder %s24, 0
      %p129 = por %p127, %p128
      %p130 = scmp.ne.s32.totalorder %s118, %s119
      %p131 = scmp.eq.s32.totalorder %s25, 1
      %p132 = por %p130, %p131
      %p134 = scmp.ne.s32.totalorder %s119, %s133
      %p135 = scmp.eq.s32.totalorder %s25, 0
      %p136 = por %p134, %p135
      %s137 = ssub.s32 %s19, %s26
      %p138 = scmp.eq.s32.totalorder %s137, 0
      %s140 = sadd.s32 %s139, 1
      %s141 = scalar_select %p138, %s139, %s140
      %p144 = pneg %p138
      %p145 = scmp.eq.s32.totalorder %s19, 1
      %p146 = por %p144, %p145
      %p147 = scmp.ne.s32.totalorder %s139, %s142
      %p148 = scmp.eq.s32.totalorder %s19, 0
      %p149 = por %p147, %p148
      %p150 = scmp.ne.s32.totalorder %s139, %s142
      %p151 = scmp.eq.s32.totalorder %s24, 1
      %p152 = por %p150, %p151
      %p153 = scmp.ne.s32.totalorder %s142, %s143
      %p154 = scmp.eq.s32.totalorder %s24, 0
      %p155 = por %p153, %p154
      %p156 = scmp.ne.s32.totalorder %s142, %s143
      %p157 = scmp.eq.s32.totalorder %s25, 1
      %p158 = por %p156, %p157
      %p160 = scmp.ne.s32.totalorder %s143, %s159
      %p161 = scmp.eq.s32.totalorder %s25, 0
      %p162 = por %p160, %p161
      %s163 = ssub.s32 %s19, %s26
      %p164 = scmp.eq.s32.totalorder %s163, 0
      %s166 = sadd.s32 %s165, 1
      %s167 = scalar_select %p164, %s165, %s166
      %p170 = pneg %p164
      %p171 = scmp.eq.s32.totalorder %s19, 1
      %p172 = por %p170, %p171
      %p173 = scmp.ne.s32.totalorder %s165, %s168
      %p174 = scmp.eq.s32.totalorder %s19, 0
      %p175 = por %p173, %p174
      %p176 = scmp.ne.s32.totalorder %s165, %s168
      %p177 = scmp.eq.s32.totalorder %s24, 1
      %p178 = por %p176, %p177
      %p179 = scmp.ne.s32.totalorder %s168, %s169
      %p180 = scmp.eq.s32.totalorder %s24, 0
      %p181 = por %p179, %p180
      %p182 = scmp.ne.s32.totalorder %s168, %s169
      %p183 = scmp.eq.s32.totalorder %s25, 1
      %p184 = por %p182, %p183
      %p186 = scmp.ne.s32.totalorder %s169, %s185
      %p187 = scmp.eq.s32.totalorder %s25, 0
      %p188 = por %p186, %p187
      %p189 = scmp.le.s32.totalorder 1, %s19
      %p190 = scmp.lt.s32.totalorder %s19, 3
      %p191 = pnand %p189, %p190
      %p192 = pneg %p191
      // Predicated region
      $region9: #{self_attention.1} parent=5 // pred_check
        _
      $region10: #{self_attention.1} parent=5 // pred_check_branch
        %194 = sbr.rel (%p191) target = $region12
      $region11: #{self_attention.1} parent=5 // pred_region
        %s195 = ssub.s32 %s19, 1
        // Predicated region
        $region13: #{self_attention.1} parent=11 // pred_check
          %p196 = pneg %p66
        $region14: #{self_attention.1} parent=11 // pred_check_branch
          %198 = sbr.rel (%p196) target = $region16
        $region15: #{self_attention.1} parent=11 // pred_region
          _
        $region16: #{self_attention.1} parent=11 // pred_fallthru
          _
        // Predicated region
        $region17: #{self_attention.1} parent=11 // pred_check
          %p199 = pneg %p87
        $region18: #{self_attention.1} parent=11 // pred_check_branch
          %201 = sbr.rel (%p199) target = $region20
        $region19: #{self_attention.1} parent=11 // pred_region
          _
        $region20: #{self_attention.1} parent=11 // pred_fallthru
          _
        // Predicated region
        $region21: #{self_attention.1} parent=11 // pred_check
          %p202 = pneg %p108
        $region22: #{self_attention.1} parent=11 // pred_check_branch
          %204 = sbr.rel (%p202) target = $region24
        $region23: #{self_attention.1} parent=11 // pred_region
          _
        $region24: #{self_attention.1} parent=11 // pred_fallthru
          _
        // Predicated region
        $region25: #{self_attention.1} parent=11 // pred_check
          %p205 = pneg %p129
        $region26: #{self_attention.1} parent=11 // pred_check_branch
          %207 = sbr.rel (%p205) target = $region28
        $region27: #{self_attention.1} parent=11 // pred_region
          _
        $region28: #{self_attention.1} parent=11 // pred_fallthru
          _
      $region12: #{self_attention.1} parent=5 // pred_fallthru
        _
      %p208 = scmp.lt.s32.totalorder %s19, 2
      // Predicated region
      $region29: #{self_attention.1} parent=5 // pred_check
        %p209 = pneg %p208
      $region30: #{self_attention.1} parent=5 // pred_check_branch
        %211 = sbr.rel (%p209) target = $region32
      $region31: #{self_attention.1} parent=5 // pred_region
        // Predicated region
        $region33: #{self_attention.1} parent=31 // pred_check
          %p212 = pneg %p39
        $region34: #{self_attention.1} parent=31 // pred_check_branch
          %214 = sbr.rel (%p212) target = $region36
        $region35: #{self_attention.1} parent=31 // pred_region
          %p215 = scmp.lt.s32.totalorder %s19, 1
          %s216 = scalar_select %p215, %s19, 1
          %s217 = smul.addr %s216, 8
          %s218 = scalar_lea.vmem %s0, %s217
        $region36: #{self_attention.1} parent=31 // pred_fallthru
          _
      $region32: #{self_attention.1} parent=5 // pred_fallthru
        _
      %p219 = scmp.le.s32.totalorder 1, %s19
      %p220 = scmp.lt.s32.totalorder %s19, 3
      %p221 = pnand %p219, %p220
      %p222 = pneg %p221
      // Predicated region
      $region37: #{self_attention.1} parent=5 // pred_check
        _
      $region38: #{self_attention.1} parent=5 // pred_check_branch
        %224 = sbr.rel (%p221) target = $region40
      $region39: #{self_attention.1} parent=5 // pred_region
        %s225 = ssub.s32 %s19, 1
        %p226 = scmp.lt.s32.totalorder %s24, 1
        %s227 = scalar_select %p226, %s24, 1
        %s228 = smul.addr %s227, 8
        %s229 = scalar_lea.vmem %s0, %s228
        %p230 = pneg %p45
        %p231 = pneg %p42
        %p232 = pneg %p66
        %p233 = pneg %p63
        %p234 = pneg %p87
        %p235 = pneg %p84
        %p236 = pneg %p108
        %p237 = pneg %p105
        %p238 = pneg %p129
        %p239 = pneg %p126
        %p240 = pneg %p155
        %p241 = pneg %p152
        %s242 = sand.u32 %s142, 1
        %s243 = scalar_lea.sflag [#allocation3], %s242
        %s244 = sand.u32 %s142, 1
        %s245 = smul.addr %s244, 4
        %s246 = scalar_lea.vmem [#allocation2], %s245
        %p247 = pneg %p181
        %p248 = pneg %p178
        %s249 = sand.u32 %s168, 1
        %s250 = scalar_lea.sflag [#allocation5], %s249
        %s251 = sand.u32 %s168, 1
        %s252 = smul.addr %s251, 4
        %s253 = scalar_lea.vmem [#allocation4], %s252
        %p254 = scmp.lt.s32.totalorder %s24, 1
        %s255 = scalar_select %p254, %s24, 1
        %s256 = smul.addr %s255, 8
        %s257 = scalar_lea.vmem %s0, %s256
        %v258 = vld [vmem:[%s257] sm:$0xff]
        %v259 = vld [vmem:[%s1] sm:$0xff]
        %v260 = vld [vmem:[%s1 + $0x8] sm:$0xff]
        %v261 = vld [vmem:[%s1 + $0x10] sm:$0xff]
        %v262 = vld [vmem:[%s1 + $0x18] sm:$0xff]
        %v263 = vld [vmem:[%s2] sm:$0x1]
        %v265 = vlaneseq
        %v266 = vshrl.u32 %v265, 7
        %v267 = vsub.s32 0, %v266
        %v268 = vrot.slane %v263, %v267
        %vm270 = vcmask 261120
        %v272 = vsel %vm270, %v258, 0
        %274 = vmatprep.subr.mxu0 0.0
        %275 = vmatpush1.msra.mxu0 %v259
        %276 = vmatprep.subr.mxu0 0.0
        %277 = vmatpush1.msra.mxu0 %v260
        %278 = vmatprep.subr.mxu0 0.0
        %279 = vmatpush1.msra.mxu0 %v261
        %280 = vmatprep.subr.mxu0 0.0
        %281 = vmatpush1.msra.mxu0 %v262
        %282 = vmatprep.subr.mxu0 0.0
        %283 = vmatpush1.msra.mxu0 0.0
        %284 = vmatprep.subr.mxu0 0.0
        %285 = vmatpush1.msra.mxu0 0.0
        %286 = vmatprep.subr.mxu0 0.0
        %287 = vmatpush1.msra.mxu0 0.0
        %288 = vmatprep.subr.mxu0 0.0
        %289 = vmatpush1.msra.mxu0 0.0
        %290 = vmatprep.subr.mxu0 0.0
        %291 = vmatpush1.msra.mxu0 0.0
        %292 = vmatprep.subr.mxu0 0.0
        %293 = vmatpush1.msra.mxu0 0.0
        %294 = vmatprep.subr.mxu0 0.0
        %295 = vmatpush1.msra.mxu0 0.0
        %296 = vmatprep.subr.mxu0 0.0
        %297 = vmatpush1.msra.mxu0 0.0
        %298 = vmatprep.subr.mxu0 0.0
        %299 = vmatpush1.msra.mxu0 0.0
        %300 = vmatprep.subr.mxu0 0.0
        %301 = vmatpush1.msra.mxu0 0.0
        %302 = vmatprep.subr.mxu0 0.0
        %303 = vmatpush1.msra.mxu0 0.0
        %304 = vmatprep.subr.mxu0 0.0
        %305 = vmatpush1.msra.mxu0 0.0
        %306 = vmatprep.subr.mxu0 0.0
        %307 = vmatpush1.msra.mxu0 0.0
        %308 = vmatprep.subr.mxu0 0.0
        %309 = vmatpush1.msra.mxu0 0.0
        %310 = vmatprep.subr.mxu0 0.0
        %311 = vmatpush1.msra.mxu0 0.0
        %312 = vmatprep.subr.mxu0 0.0
        %313 = vmatpush1.msra.mxu0 0.0
        %314 = vmatprep.subr.mxu0 0.0
        %315 = vmatpush1.msra.mxu0 0.0
        %316 = vmatprep.subr.mxu0 0.0
        %317 = vmatpush1.msra.mxu0 0.0
        %318 = vmatprep.subr.mxu0 0.0
        %319 = vmatpush1.msra.mxu0 0.0
        %320 = vmatprep.subr.mxu0 0.0
        %321 = vmatpush1.msra.mxu0 0.0
        %322 = vmatprep.subr.mxu0 0.0
        %323 = vmatpush1.msra.mxu0 0.0
        %324 = vmatprep.subr.mxu0 0.0
        %325 = vmatpush1.msra.mxu0 0.0
        %326 = vmatprep.subr.mxu0 0.0
        %327 = vmatpush1.msra.mxu0 0.0
        %328 = vmatprep.subr.mxu0 0.0
        %329 = vmatpush1.msra.mxu0 0.0
        %330 = vmatprep.subr.mxu0 0.0
        %331 = vmatpush1.msra.mxu0 0.0
        %332 = vmatprep.subr.mxu0 0.0
        %333 = vmatpush1.msra.mxu0 0.0
        %334 = vmatprep.subr.mxu0 0.0
        %335 = vmatpush1.msra.mxu0 0.0
        %336 = vmatprep.subr.mxu0 0.0
        %337 = vmatpush1.msra.mxu0 0.0
        %338 = vmatprep.mubr.f32.mxu0 0.0
        %339 = vmatmul.mubr.f32.gmra.mrb[0].mxu0 %v272
        %v340 = vpop.f32.mrb[0].mxu0
        %v341 = vadd.f32 %v268, %v340
        %v342 = vpop.f32.mrb[0].mxu0
        %343 = vdwg.mxu0
        %v344 = vtanh.pop %v341
        %v345 = vld [vmem:[%s3] sm:$0xff]
        %v346 = vld [vmem:[%s3 + $0x8] sm:$0xff]
        %v347 = vld [vmem:[%s4] sm:$0x1]
        %v349 = vlaneseq
        %v350 = vshrl.u32 %v349, 7
        %v351 = vsub.s32 0, %v350
        %v352 = vrot.slane %v347, %v351
        %vm354 = vcmask 130048
        %v356 = vsel %vm354, %v344, 0
        %358 = vmatprep.subr.mxu0 0.0
        %359 = vmatpush1.msra.mxu0 %v345
        %360 = vmatprep.subr.mxu0 0.0
        %361 = vmatpush1.msra.mxu0 %v346
        %362 = vmatprep.subr.mxu0 0.0
        %363 = vmatpush1.msra.mxu0 0.0
        %364 = vmatprep.subr.mxu0 0.0
        %365 = vmatpush1.msra.mxu0 0.0
        %366 = vmatprep.subr.mxu0 0.0
        %367 = vmatpush1.msra.mxu0 0.0
        %368 = vmatprep.subr.mxu0 0.0
        %369 = vmatpush1.msra.mxu0 0.0
        %370 = vmatprep.subr.mxu0 0.0
        %371 = vmatpush1.msra.mxu0 0.0
        %372 = vmatprep.subr.mxu0 0.0
        %373 = vmatpush1.msra.mxu0 0.0
        %374 = vmatprep.subr.mxu0 0.0
        %375 = vmatpush1.msra.mxu0 0.0
        %376 = vmatprep.subr.mxu0 0.0
        %377 = vmatpush1.msra.mxu0 0.0
        %378 = vmatprep.subr.mxu0 0.0
        %379 = vmatpush1.msra.mxu0 0.0
        %380 = vmatprep.subr.mxu0 0.0
        %381 = vmatpush1.msra.mxu0 0.0
        %382 = vmatprep.subr.mxu0 0.0
        %383 = vmatpush1.msra.mxu0 0.0
        %384 = vmatprep.subr.mxu0 0.0
        %385 = vmatpush1.msra.mxu0 0.0
        %386 = vmatprep.subr.mxu0 0.0
        %387 = vmatpush1.msra.mxu0 0.0
        %388 = vmatprep.subr.mxu0 0.0
        %389 = vmatpush1.msra.mxu0 0.0
        %390 = vmatprep.subr.mxu0 0.0
        %391 = vmatpush1.msra.mxu0 0.0
        %392 = vmatprep.subr.mxu0 0.0
        %393 = vmatpush1.msra.mxu0 0.0
        %394 = vmatprep.subr.mxu0 0.0
        %395 = vmatpush1.msra.mxu0 0.0
        %396 = vmatprep.subr.mxu0 0.0
        %397 = vmatpush1.msra.mxu0 0.0
        %398 = vmatprep.subr.mxu0 0.0
        %399 = vmatpush1.msra.mxu0 0.0
        %400 = vmatprep.subr.mxu0 0.0
        %401 = vmatpush1.msra.mxu0 0.0
        %402 = vmatprep.subr.mxu0 0.0
        %403 = vmatpush1.msra.mxu0 0.0
        %404 = vmatprep.subr.mxu0 0.0
        %405 = vmatpush1.msra.mxu0 0.0
        %406 = vmatprep.subr.mxu0 0.0
        %407 = vmatpush1.msra.mxu0 0.0
        %408 = vmatprep.subr.mxu0 0.0
        %409 = vmatpush1.msra.mxu0 0.0
        %410 = vmatprep.subr.mxu0 0.0
        %411 = vmatpush1.msra.mxu0 0.0
        %412 = vmatprep.subr.mxu0 0.0
        %413 = vmatpush1.msra.mxu0 0.0
        %414 = vmatprep.subr.mxu0 0.0
        %415 = vmatpush1.msra.mxu0 0.0
        %416 = vmatprep.subr.mxu0 0.0
        %417 = vmatpush1.msra.mxu0 0.0
        %418 = vmatprep.subr.mxu0 0.0
        %419 = vmatpush1.msra.mxu0 0.0
        %420 = vmatprep.subr.mxu0 0.0
        %421 = vmatpush1.msra.mxu0 0.0
        %422 = vmatprep.mubr.f32.mxu0 0.0
        %423 = vmatmul.mubr.f32.gmra.mrb[0].mxu0 %v356
        %v424 = vpop.f32.mrb[0].mxu0
        %v425 = vadd.f32 %v352, %v424
        %v426 = vpop.f32.mrb[0].mxu0
        %427 = vdwg.mxu0
        %428 = vxpose.xlu0.b32.start [1/16] %v425, 128
        %429 = vxpose.xlu0.b32.cont [2/16] 0.0, 128
        %430 = vxpose.xlu0.b32.cont [3/16] 0.0, 128
        %431 = vxpose.xlu0.b32.cont [4/16] 0.0, 128
        %432 = vxpose.xlu0.b32.cont [5/16] 0.0, 128
        %433 = vxpose.xlu0.b32.cont [6/16] 0.0, 128
        %434 = vxpose.xlu0.b32.cont [7/16] 0.0, 128
        %435 = vxpose.xlu0.b32.cont [8/16] 0.0, 128
        %436 = vxpose.xlu0.b32.cont [9/16] 0.0, 128
        %437 = vxpose.xlu0.b32.cont [10/16] 0.0, 128
        %438 = vxpose.xlu0.b32.cont [11/16] 0.0, 128
        %439 = vxpose.xlu0.b32.cont [12/16] 0.0, 128
        %440 = vxpose.xlu0.b32.cont [13/16] 0.0, 128
        %441 = vxpose.xlu0.b32.cont [14/16] 0.0, 128
        %442 = vxpose.xlu0.b32.cont [15/16] 0.0, 128
        %443 = vxpose.xlu0.b32.end [16/16] 0.0, 128
        %v444 = vpop.trf.xlu0
        %v445 = vpop.trf.xlu0
        %v446 = vpop.trf.xlu0
        %v447 = vpop.trf.xlu0
        %v448 = vpop.trf.xlu0
        %v449 = vpop.trf.xlu0
        %v450 = vpop.trf.xlu0
        %v451 = vpop.trf.xlu0
        %v452 = vpop.trf.xlu0
        %v453 = vpop.trf.xlu0
        %v454 = vpop.trf.xlu0
        %v455 = vpop.trf.xlu0
        %v456 = vpop.trf.xlu0
        %v457 = vpop.trf.xlu0
        %v458 = vpop.trf.xlu0
        %v459 = vpop.trf.xlu0
        %vm460 = vcmask 60416
        %v461 = vsel %vm460, %v444, -inf
        %462 = vmax.xlane.f32.xlu0 %v461
        %v463 = vpop.xlane.xlu0 %462
        %v464 = vsub.f32 %v444, %v463
        %v465 = vmul.f32 %v464, 1.442695
        %v466 = vpow.pop %v465
        %v467 = vsel %vm460, %v466, 0.0
        %468 = vadd.xlane.f32.xlu0 %v467
        %v469 = vpop.xlane.xlu0 %468
        %v470 = vrcp.pop %v469
        %v471 = vmul.f32 %v466, %v470
        %vm472 = vcmask 64512
        %v474 = vsel %vm472, %v471, 0
        %476 = vmatprep.subr.mxu0 0.0
        %477 = vmatpush1.msra.mxu0 %v258
        %478 = vmatprep.subr.mxu0 0.0
        %479 = vmatpush1.msra.mxu0 0.0
        %480 = vmatprep.subr.mxu0 0.0
        %481 = vmatpush1.msra.mxu0 0.0
        %482 = vmatprep.subr.mxu0 0.0
        %483 = vmatpush1.msra.mxu0 0.0
        %484 = vmatprep.subr.mxu0 0.0
        %485 = vmatpush1.msra.mxu0 0.0
        %486 = vmatprep.subr.mxu0 0.0
        %487 = vmatpush1.msra.mxu0 0.0
        %488 = vmatprep.subr.mxu0 0.0
        %489 = vmatpush1.msra.mxu0 0.0
        %490 = vmatprep.subr.mxu0 0.0
        %491 = vmatpush1.msra.mxu0 0.0
        %492 = vmatprep.subr.mxu0 0.0
        %493 = vmatpush1.msra.mxu0 0.0
        %494 = vmatprep.subr.mxu0 0.0
        %495 = vmatpush1.msra.mxu0 0.0
        %496 = vmatprep.subr.mxu0 0.0
        %497 = vmatpush1.msra.mxu0 0.0
        %498 = vmatprep.subr.mxu0 0.0
        %499 = vmatpush1.msra.mxu0 0.0
        %500 = vmatprep.subr.mxu0 0.0
        %501 = vmatpush1.msra.mxu0 0.0
        %502 = vmatprep.subr.mxu0 0.0
        %503 = vmatpush1.msra.mxu0 0.0
        %504 = vmatprep.subr.mxu0 0.0
        %505 = vmatpush1.msra.mxu0 0.0
        %506 = vmatprep.subr.mxu0 0.0
        %507 = vmatpush1.msra.mxu0 0.0
        %508 = vmatprep.subr.mxu0 0.0
        %509 = vmatpush1.msra.mxu0 0.0
        %510 = vmatprep.subr.mxu0 0.0
        %511 = vmatpush1.msra.mxu0 0.0
        %512 = vmatprep.subr.mxu0 0.0
        %513 = vmatpush1.msra.mxu0 0.0
        %514 = vmatprep.subr.mxu0 0.0
        %515 = vmatpush1.msra.mxu0 0.0
        %516 = vmatprep.subr.mxu0 0.0
        %517 = vmatpush1.msra.mxu0 0.0
        %518 = vmatprep.subr.mxu0 0.0
        %519 = vmatpush1.msra.mxu0 0.0
        %520 = vmatprep.subr.mxu0 0.0
        %521 = vmatpush1.msra.mxu0 0.0
        %522 = vmatprep.subr.mxu0 0.0
        %523 = vmatpush1.msra.mxu0 0.0
        %524 = vmatprep.subr.mxu0 0.0
        %525 = vmatpush1.msra.mxu0 0.0
        %526 = vmatprep.subr.mxu0 0.0
        %527 = vmatpush1.msra.mxu0 0.0
        %528 = vmatprep.subr.mxu0 0.0
        %529 = vmatpush1.msra.mxu0 0.0
        %530 = vmatprep.subr.mxu0 0.0
        %531 = vmatpush1.msra.mxu0 0.0
        %532 = vmatprep.subr.mxu0 0.0
        %533 = vmatpush1.msra.mxu0 0.0
        %534 = vmatprep.subr.mxu0 0.0
        %535 = vmatpush1.msra.mxu0 0.0
        %536 = vmatprep.subr.mxu0 0.0
        %537 = vmatpush1.msra.mxu0 0.0
        %538 = vmatprep.subr.mxu0 0.0
        %539 = vmatpush1.msra.mxu0 0.0
        %540 = vmatprep.mubr.f32.mxu0 0.0
        %541 = vmatmul.mubr.f32.gmra.mrb[0].mxu0 %v474
        %v542 = vpop.f32.mrb[0].mxu0
        %v543 = vadd.f32 0.0, %v542
        %v544 = vpop.f32.mrb[0].mxu0
        %545 = vdwg.mxu0
        %vm546 = vcmask 257024
        %547 = vst.msk [vmem:[%s246] sm:$0xf] %vm546, %v543
        %548 = vst.msk [vmem:[%s253] sm:$0xf] %vm460, %v471
        %s549 = sand.u32 %s142, 1
        %s550 = scalar_lea.sflag [#allocation3], %s549
        %s551 = sand.u32 %s142, 1
        %s552 = smul.addr %s551, 4
        %s553 = scalar_lea.vmem [#allocation2], %s552
        %s554 = sand.u32 %s168, 1
        %s555 = scalar_lea.sflag [#allocation5], %s554
        %s556 = sand.u32 %s168, 1
        %s557 = smul.addr %s556, 4
        %s558 = scalar_lea.vmem [#allocation4], %s557
        // Predicated region
        $region41: #{self_attention.1} parent=39 // pred_check
          %p559 = pneg %p152
        $region42: #{self_attention.1} parent=39 // pred_check_branch
          %561 = sbr.rel (%p559) target = $region44
        $region43: #{self_attention.1} parent=39 // pred_region
          %s563 = ssub.s32 64, 64
          %564 = vsyncadd %s550, %s563
          %s565 = smul.addr %s24, 64
          %s566 = scalar_lea.hbm %s5, %s565
          %s568 = sshll.u32 %s553, 4
          %s569 = int_to_ptr.vmem [resolvable:$true] %s568
          %571 = dma.vmem_to_hbm [thread:$0]  %s569, 64, %s566, %s550
        $region44: #{self_attention.1} parent=39 // pred_fallthru
          _
        // Predicated region
        $region45: #{self_attention.1} parent=39 // pred_check
          %p572 = pneg %p178
        $region46: #{self_attention.1} parent=39 // pred_check_branch
          %574 = sbr.rel (%p572) target = $region48
        $region47: #{self_attention.1} parent=39 // pred_region
          %s576 = ssub.s32 64, 64
          %577 = vsyncadd %s555, %s576
          %s578 = smul.addr %s24, 64
          %s579 = scalar_lea.hbm %s6, %s578
          %s581 = sshll.u32 %s558, 4
          %s582 = int_to_ptr.vmem [resolvable:$true] %s581
          %584 = dma.vmem_to_hbm [thread:$0]  %s582, 64, %s579, %s555
        $region48: #{self_attention.1} parent=39 // pred_fallthru
          _
      $region40: #{self_attention.1} parent=5 // pred_fallthru
        _
      %p585 = scmp.le.s32.totalorder 2, %s19
      // Predicated region
      $region49: #{self_attention.1} parent=5 // pred_check
        %p586 = pneg %p585
      $region50: #{self_attention.1} parent=5 // pred_check_branch
        %588 = sbr.rel (%p586) target = $region52
      $region51: #{self_attention.1} parent=5 // pred_region
        %s589 = ssub.s32 %s19, 2
        // Predicated region
        $region53: #{self_attention.1} parent=51 // pred_check
          %p590 = pneg %p158
        $region54: #{self_attention.1} parent=51 // pred_check_branch
          %592 = sbr.rel (%p590) target = $region56
        $region55: #{self_attention.1} parent=51 // pred_region
          %s593 = sand.u32 %s143, 1
          %s594 = scalar_lea.sflag [#allocation3], %s593
          %s595 = sand.u32 %s143, 1
          %s596 = smul.addr %s595, 4
          %s597 = scalar_lea.vmem [#allocation2], %s596
          %598 = dma.done %s594, 64
        $region56: #{self_attention.1} parent=51 // pred_fallthru
          _
        // Predicated region
        $region57: #{self_attention.1} parent=51 // pred_check
          %p599 = pneg %p184
        $region58: #{self_attention.1} parent=51 // pred_check_branch
          %601 = sbr.rel (%p599) target = $region60
        $region59: #{self_attention.1} parent=51 // pred_region
          %s602 = sand.u32 %s169, 1
          %s603 = scalar_lea.sflag [#allocation5], %s602
          %s604 = sand.u32 %s169, 1
          %s605 = smul.addr %s604, 4
          %s606 = scalar_lea.vmem [#allocation4], %s605
          %607 = dma.done %s603, 64
        $region60: #{self_attention.1} parent=51 // pred_fallthru
          _
      $region52: #{self_attention.1} parent=5 // pred_fallthru
        _
    $region6: #{self_attention.1} parent=1 // loop_footer
      %s23 = sadd.s32 1, %s19
    $region7: #{self_attention.1} parent=1 // loop_footer_branch
      %18 = sbr.rel target = $region3
    $region8: #{self_attention.1} parent=1 // loop_exit
      _
    %608 = vsyncpa [#allocation3], 1
    %s609 = scalar_lea.sflag [#allocation3], 1
    %610 = vsyncpa %s609, 1
    %611 = vsyncpa [#allocation5], 1
    %s612 = scalar_lea.sflag [#allocation5], 1
    %613 = vsyncpa %s612, 1

</llo_original>
